<compile_context>
chip_gen: v7x
topology: tpu7x:2x2x1
jax: 0.10.0
libtpu: 0.0.40
codegen_flags: <defaults>
</compile_context>

<pallas_src>
import functools

import jax
import jax.numpy as jnp
from jax.experimental import pallas as pl
from jax.experimental.pallas import tpu as pltpu

NEG_SLOPE = 0.01            # PyTorch nn.LeakyReLU default
_MIB = 1024 * 1024
_LANE = 128
_TARGET_BLOCK_BYTES = 3 * _MIB     # per-grid-step x block (two-pass path)
_TARGET_CHUNK_ELEMS = 16 * 1024    # in-kernel compute chunk (~16 f32 vregs per temp)


def _round_up(n, m):
    return ((n + m - 1) // m) * m


def _largest_aligned_divisor(n, target):
    """Largest multiple-of-128 divisor of n that is <= max(target, 128).

    n must be a positive multiple of 128, so 128 always qualifies.
    """
    t = min(max(target, _LANE), n)
    t -= t % _LANE
    while t >= _LANE:
        if n % t == 0:
            return t
        t -= _LANE
    return _LANE


def _vmem_capacity_bytes():
    try:
        info = pltpu.get_tpu_info()
        cap = int(getattr(info, "vmem_capacity_bytes", 0))
        if cap > 0:
            return cap
    except Exception:
        pass
    return 64 * _MIB   # v7x-safe conservative fallback


# ----------------------------------------------------------------------------
# Fused single-pass kernel (x read from HBM once per batch element)
# ----------------------------------------------------------------------------
def _fused_kernel(x_ref, wdt_ref, bd_ref, wu_ref, but_ref, o_ref, lane_acc,
                  *, cw, inv_p):
    """x_ref: (1,S,C,Pp)  wdt:(C,Cr)  bd:(1,Cr)  wu:(C,S,Cr)  but:(C,S)
    o_ref: (1,C,Pp)  lane_acc: (C,cw) f32 scratch."""
    num_scales = x_ref.shape[1]
    pp = x_ref.shape[3]
    n_chunks = pp // cw

    # -- squeeze: pooled[c] = (1/P) * sum_{s,p} x[s,c,p] (padding lanes are 0) --
    lane_acc[...] = jnp.zeros_like(lane_acc)

    @pl.loop(0, n_chunks)
    def _(ci):
        off = pl.multiple_of(ci * cw, cw)
        part = x_ref[0, 0, :, pl.ds(off, cw)].astype(jnp.float32)
        for s in range(1, num_scales):
            part = part + x_ref[0, s, :, pl.ds(off, cw)].astype(jnp.float32)
        lane_acc[...] += part

    pooled = jnp.sum(lane_acc[...], axis=-1, keepdims=True) * inv_p      # (C, 1)

    # -- excite (tiny, VPU-only; channels stay on sublanes, no transposes) -----
    h = jnp.sum(wdt_ref[...] * pooled, axis=0, keepdims=True) + bd_ref[...]   # (1, Cr)
    h = jnp.where(h > 0, h, NEG_SLOPE * h)                                     # LeakyReLU
    logits = jnp.sum(wu_ref[...] * h[None, :, :], axis=-1) + but_ref[...]      # (C, S)
    m = jnp.max(logits, axis=-1, keepdims=True)
    e = jnp.exp(logits - m)
    attn = e / jnp.sum(e, axis=-1, keepdims=True)                              # (C, S)

    # -- reweight: out[c,p] = sum_s attn[c,s] * x[s,c,p] ------------------------
    @pl.loop(0, n_chunks)
    def _(ci):
        off = pl.multiple_of(ci * cw, cw)
        acc = x_ref[0, 0, :, pl.ds(off, cw)].astype(jnp.float32) * attn[:, 0:1]
        for s in range(1, num_scales):
            acc = acc + (x_ref[0, s, :, pl.ds(off, cw)].astype(jnp.float32)
                         * attn[:, s:s + 1])
        o_ref[0, :, pl.ds(off, cw)] = acc.astype(o_ref.dtype)


# ----------------------------------------------------------------------------
# Two-pass fallback kernels (large P)
# ----------------------------------------------------------------------------
def _pool_kernel(x_ref, pool_ref, lane_acc, *, cw, inv_p):
    """Grid (B, n_pt), spatial-tile axis last ("arbitrary").
    x_ref: (1,S,C,PT)  pool_ref: (1,C,1) revisited  lane_acc: (C,cw) scratch."""
    p = pl.program_id(1)

    @pl.when(p == 0)
    def _():
        lane_acc[...] = jnp.zeros_like(lane_acc)

    num_scales = x_ref.shape[1]
    n_chunks = x_ref.shape[3] // cw

    @pl.loop(0, n_chunks)
    def _(ci):
        off = pl.multiple_of(ci * cw, cw)
        part = x_ref[0, 0, :, pl.ds(off, cw)].astype(jnp.float32)
        for s in range(1, num_scales):
            part = part + x_ref[0, s, :, pl.ds(off, cw)].astype(jnp.float32)
        lane_acc[...] += part

    # Single cross-lane reduce + tiny store only on the last spatial tile.
    @pl.when(p == pl.num_programs(1) - 1)
    def _():
        pool_ref[...] = (jnp.sum(lane_acc[...], axis=-1, keepdims=True) * inv_p)[None]


def _reweight_kernel(attn_ref, x_ref, o_ref, *, cw):
    """attn_ref: (1,C,S) f32   x_ref: (1,S,C,PT)   o_ref: (1,C,PT)."""
    num_scales = x_ref.shape[1]
    n_chunks = x_ref.shape[3] // cw
    attn = attn_ref[0]                                   # (C, S)

    @pl.loop(0, n_chunks)
    def _(ci):
        off = pl.multiple_of(ci * cw, cw)
        acc = x_ref[0, 0, :, pl.ds(off, cw)].astype(jnp.float32) * attn[:, 0:1]
        for s in range(1, num_scales):
            acc = acc + (x_ref[0, s, :, pl.ds(off, cw)].astype(jnp.float32)
                         * attn[:, s:s + 1])
        o_ref[0, :, pl.ds(off, cw)] = acc.astype(o_ref.dtype)


# ----------------------------------------------------------------------------
# Wrapper
# ----------------------------------------------------------------------------
@functools.partial(jax.jit, static_argnames=("force_two_pass",))
def selective_scale_leaky_layer(x, w_down, b_down, w_up, b_up, *,
                                force_two_pass=False):
    """x: (B, S, C, X, Y, Z) -> (B, C, X, Y, Z)."""
    B, S, C, X, Y, Z = x.shape
    Cr = w_down.shape[0]
    P = X * Y * Z
    isz = jnp.dtype(x.dtype).itemsize
    f32sz = 4

    # Spatial lanes padded to a multiple of 128: every block stays (8,128)-legal
    # and every store stays lane-dense; padded lanes are zeros so sums are exact.
    Pp = _round_up(P, _LANE)
    x_flat = x.reshape(B, S, C, P)
    if Pp != P:
        x_flat = jnp.pad(x_flat, ((0, 0), (0, 0), (0, 0), (0, Pp - P)))

    capacity = _vmem_capacity_bytes()
    budget = (capacity * 3) // 4                 # headroom below physical VMEM
    cw_target = max(_LANE, (_TARGET_CHUNK_ELEMS // max(C, 1)) // _LANE * _LANE)

    x_slab_bytes = S * C * Pp * isz
    o_slab_bytes = C * Pp * isz
    fused_need = 2 * (x_slab_bytes + o_slab_bytes) + C * cw_target * f32sz + _MIB
    use_fused = (not force_two_pass) and (fused_need <= budget)
    inv_p = 1.0 / P

    if use_fused:
        # ---------------- fused single pass: x streamed from HBM once ----------
        cw = _largest_aligned_divisor(Pp, cw_target)
        wdt = jnp.transpose(w_down).astype(jnp.float32)             # (C, Cr)
        bd2 = b_down.reshape(1, Cr).astype(jnp.float32)             # (1, Cr)
        wu3 = jnp.transpose(w_up, (1, 0, 2)).astype(jnp.float32)    # (C, S, Cr)
        but = jnp.transpose(b_up).astype(jnp.float32)               # (C, S)
        vmem_limit = int(min(capacity, max(fused_need + 8 * _MIB, 32 * _MIB)))

        out_flat = pl.pallas_call(
            functools.partial(_fused_kernel, cw=cw, inv_p=inv_p),
            out_shape=jax.ShapeDtypeStruct((B, C, Pp), x.dtype),
            grid_spec=pltpu.PrefetchScalarGridSpec(
                num_scalar_prefetch=0,
                grid=(B,),
                in_specs=[
                    pl.BlockSpec((1, S, C, Pp), lambda b: (b, 0, 0, 0)),
                    pl.BlockSpec((C, Cr), lambda b: (0, 0)),
                    pl.BlockSpec((1, Cr), lambda b: (0, 0)),
                    pl.BlockSpec((C, S, Cr), lambda b: (0, 0, 0)),
                    pl.BlockSpec((C, S), lambda b: (0, 0)),
                ],
                out_specs=pl.BlockSpec((1, C, Pp), lambda b: (b, 0, 0)),
                scratch_shapes=[pltpu.VMEM((C, cw), jnp.float32)],
            ),
            compiler_params=pltpu.CompilerParams(
                dimension_semantics=("parallel",),
                vmem_limit_bytes=vmem_limit,
            ),
        )(x_flat, wdt, bd2, wu3, but)
        return out_flat[:, :, :P].reshape(B, C, X, Y, Z)

    # -------------------- two-pass fallback (large P) ---------------------------
    # Spatial tile sized for ~3 MiB x blocks per grid step, capped by VMEM budget.
    per_lane_bytes = 2 * (S * C * isz + C * isz + S * C * f32sz)
    pt_vmem_cap = max(_LANE, (budget // per_lane_bytes) // _LANE * _LANE)
    pt_target = max(_LANE, (_TARGET_BLOCK_BYTES // (S * C * isz)) // _LANE * _LANE)
    PT = _largest_aligned_divisor(Pp, min(pt_target, pt_vmem_cap))
    n_pt = Pp // PT
    cw = _largest_aligned_divisor(PT, cw_target)

    x_blk_bytes = S * C * PT * isz
    o_blk_bytes = C * PT * isz

    # Phase 1: pooled mean over scales + spatial.
    vmem1 = int(min(capacity,
                    max(2 * x_blk_bytes + C * cw * f32sz + 8 * _MIB, 32 * _MIB)))
    pooled = pl.pallas_call(
        functools.partial(_pool_kernel, cw=cw, inv_p=inv_p),
        out_shape=jax.ShapeDtypeStruct((B, C, 1), jnp.float32),
        grid_spec=pltpu.PrefetchScalarGridSpec(
            num_scalar_prefetch=0,
            grid=(B, n_pt),
            in_specs=[pl.BlockSpec((1, S, C, PT), lambda b, p: (b, 0, 0, p))],
            out_specs=pl.BlockSpec((1, C, 1), lambda b, p: (b, 0, 0)),
            scratch_shapes=[pltpu.VMEM((C, cw), jnp.float32)],
        ),
        compiler_params=pltpu.CompilerParams(
            dimension_semantics=("parallel", "arbitrary"),
            vmem_limit_bytes=vmem1,
        ),
    )(x_flat)[:, :, 0]                                             # (B, C)

    # Excite path: tiny (O(B*S*C)), plain XLA; kept off the MXU / hot path.
    h = pooled @ w_down.astype(jnp.float32).T + b_down.astype(jnp.float32)[None]
    h = jnp.where(h > 0, h, NEG_SLOPE * h)
    logits = (jnp.einsum("br,scr->bsc", h, w_up.astype(jnp.float32))
              + b_up.astype(jnp.float32)[None])
    attn = jax.nn.softmax(logits, axis=1)                          # (B, S, C)
    attn_t = jnp.transpose(attn, (0, 2, 1))                        # (B, C, S) f32

    # Phase 2: reweight + collapse scales (lane-dense output tiles).
    vmem2 = int(min(capacity,
                    max(2 * (x_blk_bytes + o_blk_bytes + C * S * f32sz) + 8 * _MIB,
                        32 * _MIB)))
    out_flat = pl.pallas_call(
        functools.partial(_reweight_kernel, cw=cw),
        out_shape=jax.ShapeDtypeStruct((B, C, Pp), x.dtype),
        grid_spec=pltpu.PrefetchScalarGridSpec(
            num_scalar_prefetch=0,
            grid=(B, n_pt),
            in_specs=[
                pl.BlockSpec((1, C, S), lambda b, p: (b, 0, 0)),
                pl.BlockSpec((1, S, C, PT), lambda b, p: (b, 0, 0, p)),
            ],
            out_specs=pl.BlockSpec((1, C, PT), lambda b, p: (b, 0, p)),
        ),
        compiler_params=pltpu.CompilerParams(
            dimension_semantics=("parallel", "parallel"),
            vmem_limit_bytes=vmem2,
        ),
    )(attn_t, x_flat)
    return out_flat[:, :, :P].reshape(B, C, X, Y, Z)


def reference_forward(x, w_down, b_down, w_up, b_up):
    """Plain-JAX mirror of the PyTorch forward for correctness checking."""
    s = jnp.sum(x, axis=1)                                   # (B, C, X, Y, Z)
    pooled = jnp.mean(s, axis=(2, 3, 4))                     # (B, C)
    h = pooled @ w_down.T + b_down                           # (B, Cr)
    h = jnp.where(h > 0, h, NEG_SLOPE * h)
    logits = jnp.einsum("br,scr->bsc", h, w_up) + b_up[None]  # (B, S, C)
    attn = jax.nn.softmax(logits, axis=1)
    out = jnp.sum(x * attn[..., None, None, None], axis=1)   # (B, C, X, Y, Z)
    return out


if __name__ == "__main__":
    # Small shapes: batch=2, num_scales=3, num_channels=8, spatial=16^3 (P=4096).
    B, S, C = 2, 3, 8
    X = Y = Z = 16
    reduction_ratio = 2
    Cr = C // reduction_ratio

    key = jax.random.PRNGKey(0)
    kx, kwd, kbd, kwu, kbu = jax.random.split(key, 5)

    x = jax.random.normal(kx, (B, S, C, X, Y, Z), dtype=jnp.float32)
    # 1x1x1 Conv3d == dense over channels; deterministic synthetic parameters.
    w_down = 0.3 * jax.random.normal(kwd, (Cr, C), dtype=jnp.float32)
    b_down = 0.1 * jax.random.normal(kbd, (Cr,), dtype=jnp.float32)
    w_up = 0.3 * jax.random.normal(kwu, (S, C, Cr), dtype=jnp.float32)
    b_up = 0.1 * jax.random.normal(kbu, (S, C), dtype=jnp.float32)

    ref = reference_forward(x, w_down, b_down, w_up, b_up)

    # Fused single-pass path (default for shapes whose per-batch slab fits VMEM).
    out_fused = jax.block_until_ready(
        selective_scale_leaky_layer(x, w_down, b_down, w_up, b_up))
    assert out_fused.shape == (B, C, X, Y, Z)
    assert jnp.allclose(out_fused, ref, atol=1e-5, rtol=1e-5), "fused mismatch"

    # Two-pass fallback path (used for large P) — exercised explicitly here.
    out_two = jax.block_until_ready(
        selective_scale_leaky_layer(x, w_down, b_down, w_up, b_up,
                                    force_two_pass=True))
    assert jnp.allclose(out_two, ref, atol=1e-5, rtol=1e-5), "two-pass mismatch"

    print("KERNEL_OK")
</pallas_src>

<mosaic_0001>
module attributes {stable_mosaic.version = 11 : i64} {
  func.func @_fused_kernel(%arg0: i32, %arg1: memref<1x3x8x4096xf32, #tpu.memory_space<vmem>>, %arg2: memref<8x4xf32, #tpu.memory_space<vmem>>, %arg3: memref<1x4xf32, #tpu.memory_space<vmem>>, %arg4: memref<8x3x4xf32, #tpu.memory_space<vmem>>, %arg5: memref<8x3xf32, #tpu.memory_space<vmem>>, %arg6: memref<1x8x4096xf32, #tpu.memory_space<vmem>>, %arg7: memref<8x2048xf32, #tpu.memory_space<vmem>>) attributes {dimension_semantics = [#tpu.dimension_semantics<parallel>], iteration_bounds = array<i64: 2>, scalar_prefetch = 0 : i64, scratch_operands = 1 : i64, tpu.core_type = #tpu.core_type<tc>, window_params = [{transform_indices = @transform_0, window_bounds = array<i64: 1, 3, 8, 4096>}, {pipeline_mode = #tpu.pipeline_mode<synchronous>, transform_indices = @transform_1, window_bounds = array<i64: 8, 4>}, {pipeline_mode = #tpu.pipeline_mode<synchronous>, transform_indices = @transform_2, window_bounds = array<i64: 1, 4>}, {pipeline_mode = #tpu.pipeline_mode<synchronous>, transform_indices = @transform_3, window_bounds = array<i64: 8, 3, 4>}, {pipeline_mode = #tpu.pipeline_mode<synchronous>, transform_indices = @transform_4, window_bounds = array<i64: 8, 3>}, {transform_indices = @transform_5, window_bounds = array<i64: 1, 8, 4096>}]} {
    %cst = arith.constant 0.000000e+00 : f32
    %0 = vector.broadcast %cst : f32 to vector<8x2048xf32>
    %c0 = arith.constant 0 : index
    %c0_0 = arith.constant 0 : index
    %1 = vector.load %arg7[%c0, %c0_0] : memref<8x2048xf32, #tpu.memory_space<vmem>>, vector<8x2048xf32>
    tpu.vector_store %arg7[%c0, %c0_0], %0 {strides = array<i32>} : memref<8x2048xf32, #tpu.memory_space<vmem>>, vector<8x2048xf32>,
    %c0_i32 = arith.constant 0 : i32
    %c2_i32 = arith.constant 2 : i32
    %2 = arith.addi %c0_i32, %c2_i32 : i32
    %c1_i32 = arith.constant 1 : i32
    scf.for %arg8 = %c0_i32 to %2 step %c1_i32  : i32 {
      %c1_i32_25 = arith.constant 1 : i32
      %37 = arith.muli %arg8, %c1_i32_25 : i32
      %c0_i32_26 = arith.constant 0 : i32
      %38 = arith.addi %c0_i32_26, %37 : i32
      %c2048_i32 = arith.constant 2048 : i32
      %39 = arith.muli %38, %c2048_i32 : i32
      %40 = tpu.assume_multiple %39, 2048 : i32
      %c0_27 = arith.constant 0 : index
      %c0_28 = arith.constant 0 : index
      %c0_29 = arith.constant 0 : index
      %41 = arith.index_cast %40 : i32 to index
      %42 = vector.load %arg1[%c0_27, %c0_28, %c0_29, %41] : memref<1x3x8x4096xf32, #tpu.memory_space<vmem>>, vector<1x1x8x2048xf32>
      %43 = vector.shape_cast %42 : vector<1x1x8x2048xf32> to vector<8x2048xf32>
      %c0_30 = arith.constant 0 : index
      %c1 = arith.constant 1 : index
      %c0_31 = arith.constant 0 : index
      %44 = arith.index_cast %40 : i32 to index
      %45 = vector.load %arg1[%c0_30, %c1, %c0_31, %44] : memref<1x3x8x4096xf32, #tpu.memory_space<vmem>>, vector<1x1x8x2048xf32>
      %46 = vector.shape_cast %45 : vector<1x1x8x2048xf32> to vector<8x2048xf32>
      %47 = arith.addf %43, %46 : vector<8x2048xf32>
      %c0_32 = arith.constant 0 : index
      %c2 = arith.constant 2 : index
      %c0_33 = arith.constant 0 : index
      %48 = arith.index_cast %40 : i32 to index
      %49 = vector.load %arg1[%c0_32, %c2, %c0_33, %48] : memref<1x3x8x4096xf32, #tpu.memory_space<vmem>>, vector<1x1x8x2048xf32>
      %50 = vector.shape_cast %49 : vector<1x1x8x2048xf32> to vector<8x2048xf32>
      %51 = arith.addf %47, %50 : vector<8x2048xf32>
      %c0_34 = arith.constant 0 : index
      %c0_35 = arith.constant 0 : index
      %52 = vector.load %arg7[%c0_34, %c0_35] : memref<8x2048xf32, #tpu.memory_space<vmem>>, vector<8x2048xf32>
      %53 = arith.addf %52, %51 : vector<8x2048xf32>
      %c0_36 = arith.constant 0 : index
      %c0_37 = arith.constant 0 : index
      %54 = vector.load %arg7[%c0_36, %c0_37] : memref<8x2048xf32, #tpu.memory_space<vmem>>, vector<8x2048xf32>
      tpu.vector_store %arg7[%c0_36, %c0_37], %53 {strides = array<i32>} : memref<8x2048xf32, #tpu.memory_space<vmem>>, vector<8x2048xf32>,
    }
    %c2_i32_1 = arith.constant 2 : i32
    %c0_2 = arith.constant 0 : index
    %c0_3 = arith.constant 0 : index
    %3 = vector.load %arg7[%c0_2, %c0_3] : memref<8x2048xf32, #tpu.memory_space<vmem>>, vector<8x2048xf32>
    %cst_4 = arith.constant dense<0.000000e+00> : vector<8xf32>
    %4 = vector.multi_reduction <add>, %3, %cst_4 [1] : vector<8x2048xf32> to vector<8xf32>
    %5 = vector.shape_cast %4 : vector<8xf32> to vector<8x1xf32>
    %cst_5 = arith.constant 2.44140625E-4 : f32
    %6 = vector.broadcast %cst_5 : f32 to vector<8x1xf32>
    %7 = arith.mulf %5, %6 : vector<8x1xf32>
    %c0_6 = arith.constant 0 : index
    %c0_7 = arith.constant 0 : index
    %8 = vector.load %arg2[%c0_6, %c0_7] : memref<8x4xf32, #tpu.memory_space<vmem>>, vector<8x4xf32>
    %9 = vector.broadcast %7 : vector<8x1xf32> to vector<8x4xf32>
    %10 = arith.mulf %8, %9 : vector<8x4xf32>
    %cst_8 = arith.constant dense<0.000000e+00> : vector<4xf32>
    %11 = vector.multi_reduction <add>, %10, %cst_8 [0] : vector<8x4xf32> to vector<4xf32>
    %12 = vector.shape_cast %11 : vector<4xf32> to vector<1x4xf32>
    %c0_9 = arith.constant 0 : index
    %c0_10 = arith.constant 0 : index
    %13 = vector.load %arg3[%c0_9, %c0_10] : memref<1x4xf32, #tpu.memory_space<vmem>>, vector<1x4xf32>
    %14 = arith.addf %12, %13 : vector<1x4xf32>
    %cst_11 = arith.constant 0.000000e+00 : f32
    %15 = vector.broadcast %cst_11 : f32 to vector<1x4xf32>
    %16 = arith.cmpf ogt, %14, %15 : vector<1x4xf32>
    %cst_12 = arith.constant 0.00999999977 : f32
    %17 = vector.broadcast %cst_12 : f32 to vector<1x4xf32>
    %18 = arith.mulf %17, %14 : vector<1x4xf32>
    %19 = arith.select %16, %14, %18 : vector<1x4xi1>, vector<1x4xf32>
    %c0_13 = arith.constant 0 : index
    %c0_14 = arith.constant 0 : index
    %c0_15 = arith.constant 0 : index
    %20 = vector.load %arg4[%c0_13, %c0_14, %c0_15] : memref<8x3x4xf32, #tpu.memory_space<vmem>>, vector<8x3x4xf32>
    %21 = vector.shape_cast %19 : vector<1x4xf32> to vector<1x1x4xf32>
    %22 = vector.broadcast %21 : vector<1x1x4xf32> to vector<8x3x4xf32>
    %23 = arith.mulf %20, %22 : vector<8x3x4xf32>
    %cst_16 = arith.constant dense<0.000000e+00> : vector<8x3xf32>
    %24 = vector.multi_reduction <add>, %23, %cst_16 [2] : vector<8x3x4xf32> to vector<8x3xf32>
    %c0_17 = arith.constant 0 : index
    %c0_18 = arith.constant 0 : index
    %25 = vector.load %arg5[%c0_17, %c0_18] : memref<8x3xf32, #tpu.memory_space<vmem>>, vector<8x3xf32>
    %26 = arith.addf %24, %25 : vector<8x3xf32>
    %cst_19 = arith.constant dense<0xFF800000> : vector<8xf32>
    %27 = vector.multi_reduction <maximumf>, %26, %cst_19 [1] : vector<8x3xf32> to vector<8xf32>
    %28 = vector.shape_cast %27 : vector<8xf32> to vector<8x1xf32>
    %29 = vector.broadcast %28 : vector<8x1xf32> to vector<8x3xf32>
    %30 = arith.subf %26, %29 : vector<8x3xf32>
    %31 = math.exp %30 : vector<8x3xf32>
    %cst_20 = arith.constant dense<0.000000e+00> : vector<8xf32>
    %32 = vector.multi_reduction <add>, %31, %cst_20 [1] : vector<8x3xf32> to vector<8xf32>
    %33 = vector.shape_cast %32 : vector<8xf32> to vector<8x1xf32>
    %34 = vector.broadcast %33 : vector<8x1xf32> to vector<8x3xf32>
    %35 = arith.divf %31, %34 : vector<8x3xf32>
    %c0_i32_21 = arith.constant 0 : i32
    %c2_i32_22 = arith.constant 2 : i32
    %36 = arith.addi %c0_i32_21, %c2_i32_22 : i32
    %c1_i32_23 = arith.constant 1 : i32
    scf.for %arg8 = %c0_i32_21 to %36 step %c1_i32_23  : i32 {
      %c1_i32_25 = arith.constant 1 : i32
      %37 = arith.muli %arg8, %c1_i32_25 : i32
      %c0_i32_26 = arith.constant 0 : i32
      %38 = arith.addi %c0_i32_26, %37 : i32
      %c2048_i32 = arith.constant 2048 : i32
      %39 = arith.muli %38, %c2048_i32 : i32
      %40 = tpu.assume_multiple %39, 2048 : i32
      %c0_27 = arith.constant 0 : index
      %c0_28 = arith.constant 0 : index
      %c0_29 = arith.constant 0 : index
      %41 = arith.index_cast %40 : i32 to index
      %42 = vector.load %arg1[%c0_27, %c0_28, %c0_29, %41] : memref<1x3x8x4096xf32, #tpu.memory_space<vmem>>, vector<1x1x8x2048xf32>
      %43 = vector.shape_cast %42 : vector<1x1x8x2048xf32> to vector<8x2048xf32>
      %44 = vector.extract_strided_slice %35 {offsets = [0, 0], sizes = [8, 1], strides = [1, 1]} : vector<8x3xf32> to vector<8x1xf32>
      %45 = vector.broadcast %44 : vector<8x1xf32> to vector<8x2048xf32>
      %46 = arith.mulf %43, %45 : vector<8x2048xf32>
      %c0_30 = arith.constant 0 : index
      %c1 = arith.constant 1 : index
      %c0_31 = arith.constant 0 : index
      %47 = arith.index_cast %40 : i32 to index
      %48 = vector.load %arg1[%c0_30, %c1, %c0_31, %47] : memref<1x3x8x4096xf32, #tpu.memory_space<vmem>>, vector<1x1x8x2048xf32>
      %49 = vector.shape_cast %48 : vector<1x1x8x2048xf32> to vector<8x2048xf32>
      %50 = vector.extract_strided_slice %35 {offsets = [0, 1], sizes = [8, 1], strides = [1, 1]} : vector<8x3xf32> to vector<8x1xf32>
      %51 = vector.broadcast %50 : vector<8x1xf32> to vector<8x2048xf32>
      %52 = arith.mulf %49, %51 : vector<8x2048xf32>
      %53 = arith.addf %46, %52 : vector<8x2048xf32>
      %c0_32 = arith.constant 0 : index
      %c2 = arith.constant 2 : index
      %c0_33 = arith.constant 0 : index
      %54 = arith.index_cast %40 : i32 to index
      %55 = vector.load %arg1[%c0_32, %c2, %c0_33, %54] : memref<1x3x8x4096xf32, #tpu.memory_space<vmem>>, vector<1x1x8x2048xf32>
      %56 = vector.shape_cast %55 : vector<1x1x8x2048xf32> to vector<8x2048xf32>
      %57 = vector.extract_strided_slice %35 {offsets = [0, 2], sizes = [8, 1], strides = [1, 1]} : vector<8x3xf32> to vector<8x1xf32>
      %58 = vector.broadcast %57 : vector<8x1xf32> to vector<8x2048xf32>
      %59 = arith.mulf %56, %58 : vector<8x2048xf32>
      %60 = arith.addf %53, %59 : vector<8x2048xf32>
      %c0_34 = arith.constant 0 : index
      %c0_35 = arith.constant 0 : index
      %61 = arith.index_cast %40 : i32 to index
      %62 = vector.load %arg6[%c0_34, %c0_35, %61] : memref<1x8x4096xf32, #tpu.memory_space<vmem>>, vector<1x8x2048xf32>
      %63 = vector.shape_cast %62 : vector<1x8x2048xf32> to vector<8x2048xf32>
      %64 = vector.shape_cast %60 : vector<8x2048xf32> to vector<1x8x2048xf32>
      tpu.vector_store %arg6[%c0_34, %c0_35, %61], %64 {strides = array<i32>} : memref<1x8x4096xf32, #tpu.memory_space<vmem>>, vector<1x8x2048xf32>,
    }
    %c2_i32_24 = arith.constant 2 : i32
    return
  }
  func.func @transform_0(%arg0: i32) -> (i32, i32, i32, i32) {
    %c0_i32 = arith.constant 0 : i32
    %c0_i32_0 = arith.constant 0 : i32
    %c0_i32_1 = arith.constant 0 : i32
    %c0_i32_2 = arith.constant 0 : i32
    return %arg0, %c0_i32, %c0_i32_0, %c0_i32_1 : i32, i32, i32, i32
  }
  func.func @transform_1(%arg0: i32) -> (i32, i32) {
    %c0_i32 = arith.constant 0 : i32
    %c0_i32_0 = arith.constant 0 : i32
    %c0_i32_1 = arith.constant 0 : i32
    return %c0_i32, %c0_i32_0 : i32, i32
  }
  func.func @transform_2(%arg0: i32) -> (i32, i32) {
    %c0_i32 = arith.constant 0 : i32
    %c0_i32_0 = arith.constant 0 : i32
    %c0_i32_1 = arith.constant 0 : i32
    return %c0_i32, %c0_i32_0 : i32, i32
  }
  func.func @transform_3(%arg0: i32) -> (i32, i32, i32) {
    %c0_i32 = arith.constant 0 : i32
    %c0_i32_0 = arith.constant 0 : i32
    %c0_i32_1 = arith.constant 0 : i32
    %c0_i32_2 = arith.constant 0 : i32
    return %c0_i32, %c0_i32_0, %c0_i32_1 : i32, i32, i32
  }
  func.func @transform_4(%arg0: i32) -> (i32, i32) {
    %c0_i32 = arith.constant 0 : i32
    %c0_i32_0 = arith.constant 0 : i32
    %c0_i32_1 = arith.constant 0 : i32
    return %c0_i32, %c0_i32_0 : i32, i32
  }
  func.func @transform_5(%arg0: i32) -> (i32, i32, i32) {
    %c0_i32 = arith.constant 0 : i32
    %c0_i32_0 = arith.constant 0 : i32
    %c0_i32_1 = arith.constant 0 : i32
    return %arg0, %c0_i32, %c0_i32_0 : i32, i32, i32
  }
}

</mosaic_0001>

<llo_original>
// kernel: selective_scale_leaky_layer.1
$region0: #{selective_scale_leaky_layer.1}
  #allocation0 [shape = 'u32[]', space=smem, size = 0x4, offset = 0x4, fixed_abs, tag = 'smem constant byte address 0x4 - core index']
  #allocation1 [shape = 'u32[144,128]{1,0:T(1,128)}', space=vmem, size = 0x12000, scoped, tag = 'internal scratch']
  #allocation2 [shape = 'f32[8,2048]{1,0:T(8,128)}', space=vmem, size = 0x10000, scoped, tag = 'scratch operand']
  %s0 = inlined_call_operand.vmem [shape: f32[2,3,8,4096], index: 0, kind: input, shape index: {}]
  %s1 = inlined_call_operand.vmem [shape: f32[8,4], index: 1, kind: input, shape index: {}]
  %s2 = inlined_call_operand.vmem [shape: f32[1,4], index: 2, kind: input, shape index: {}]
  %s3 = inlined_call_operand.vmem [shape: f32[8,3,4], index: 3, kind: input, shape index: {}]
  %s4 = inlined_call_operand.vmem [shape: f32[8,3], index: 4, kind: input, shape index: {}]
  %s5 = inlined_call_operand.vmem [shape: f32[2,8,4096], index: 5, kind: output, shape index: {}]
  %s6 = sld [smem:[#allocation0]]
  $region67: #{selective_scale_leaky_layer.1} parent=0
    _
  %s8 = ssub.s32 1, %s6
  %s9 = scalar_select 0, %s8, %s6
  loop: start=0, step=1, limit=4
  $region2: #{selective_scale_leaky_layer.1} parent=0 // loop_pre_header
    _
  $region3: #{selective_scale_leaky_layer.1} parent=0 // loop_header
    %s11 = sphi 0, %s15
    %p12 = scmp.ge.s32.totalorder %s11, 4
    %s21 = sphi 0, %s23
    %s24 = sphi 0, %s21
    %s25 = sphi 0, %s24
    %s41 = sphi 0, %s25
    %s45 = sphi 0, %s45
    %s47 = sphi 0, %s45
    %s48 = sphi 0, %s47
    %s62 = sphi 0, %s48
    %s66 = sphi 0, %s66
    %s68 = sphi 0, %s66
    %s69 = sphi 0, %s68
    %s83 = sphi 0, %s69
    %s87 = sphi 0, %s87
    %s89 = sphi 0, %s87
    %s90 = sphi 0, %s89
    %s104 = sphi 0, %s90
    %s108 = sphi 0, %s108
    %s110 = sphi 0, %s108
    %s111 = sphi 0, %s110
    %s125 = sphi 0, %s111
    %s131 = sphi 0, %s133
    %s134 = sphi 0, %s131
    %s135 = sphi 0, %s134
    %s151 = sphi 0, %s135
  $region4: #{selective_scale_leaky_layer.1} parent=0 // loop_header_branch
    %14 = sbr.rel (%p12) target = $region8
  $region5: #{selective_scale_leaky_layer.1} parent=0 // loop_body
    %s16 = ssub.s32 %s11, 1
    %s17 = ssub.s32 %s11, 2
    %s18 = sadd.s32 %s11, 1
    %s19 = ssub.s32 %s11, %s18
    %p20 = scmp.eq.s32.totalorder %s19, 0
    %s22 = sadd.s32 %s21, 1
    %s23 = scalar_select %p20, %s21, %s22
    %p26 = pneg %p20
    %p27 = scmp.eq.s32.totalorder %s11, 1
    %p28 = por %p26, %p27
    %p29 = scmp.ne.s32.totalorder %s21, %s24
    %p30 = scmp.eq.s32.totalorder %s11, 0
    %p31 = por %p29, %p30
    %p32 = scmp.ne.s32.totalorder %s21, %s24
    %p33 = scmp.eq.s32.totalorder %s16, 1
    %p34 = por %p32, %p33
    %p35 = scmp.ne.s32.totalorder %s24, %s25
    %p36 = scmp.eq.s32.totalorder %s16, 0
    %p37 = por %p35, %p36
    %p38 = scmp.ne.s32.totalorder %s24, %s25
    %p39 = scmp.eq.s32.totalorder %s17, 1
    %p40 = por %p38, %p39
    %p42 = scmp.ne.s32.totalorder %s25, %s41
    %p43 = scmp.eq.s32.totalorder %s17, 0
    %p44 = por %p42, %p43
    %s46 = sadd.s32 %s45, 1
    %p49 = scmp.eq.s32.totalorder %s11, 1
    %p50 = scmp.ne.s32.totalorder %s45, %s47
    %p51 = scmp.eq.s32.totalorder %s11, 0
    %p52 = por %p50, %p51
    %p53 = scmp.ne.s32.totalorder %s45, %s47
    %p54 = scmp.eq.s32.totalorder %s16, 1
    %p55 = por %p53, %p54
    %p56 = scmp.ne.s32.totalorder %s47, %s48
    %p57 = scmp.eq.s32.totalorder %s16, 0
    %p58 = por %p56, %p57
    %p59 = scmp.ne.s32.totalorder %s47, %s48
    %p60 = scmp.eq.s32.totalorder %s17, 1
    %p61 = por %p59, %p60
    %p63 = scmp.ne.s32.totalorder %s48, %s62
    %p64 = scmp.eq.s32.totalorder %s17, 0
    %p65 = por %p63, %p64
    %s67 = sadd.s32 %s66, 1
    %p70 = scmp.eq.s32.totalorder %s11, 1
    %p71 = scmp.ne.s32.totalorder %s66, %s68
    %p72 = scmp.eq.s32.totalorder %s11, 0
    %p73 = por %p71, %p72
    %p74 = scmp.ne.s32.totalorder %s66, %s68
    %p75 = scmp.eq.s32.totalorder %s16, 1
    %p76 = por %p74, %p75
    %p77 = scmp.ne.s32.totalorder %s68, %s69
    %p78 = scmp.eq.s32.totalorder %s16, 0
    %p79 = por %p77, %p78
    %p80 = scmp.ne.s32.totalorder %s68, %s69
    %p81 = scmp.eq.s32.totalorder %s17, 1
    %p82 = por %p80, %p81
    %p84 = scmp.ne.s32.totalorder %s69, %s83
    %p85 = scmp.eq.s32.totalorder %s17, 0
    %p86 = por %p84, %p85
    %s88 = sadd.s32 %s87, 1
    %p91 = scmp.eq.s32.totalorder %s11, 1
    %p92 = scmp.ne.s32.totalorder %s87, %s89
    %p93 = scmp.eq.s32.totalorder %s11, 0
    %p94 = por %p92, %p93
    %p95 = scmp.ne.s32.totalorder %s87, %s89
    %p96 = scmp.eq.s32.totalorder %s16, 1
    %p97 = por %p95, %p96
    %p98 = scmp.ne.s32.totalorder %s89, %s90
    %p99 = scmp.eq.s32.totalorder %s16, 0
    %p100 = por %p98, %p99
    %p101 = scmp.ne.s32.totalorder %s89, %s90
    %p102 = scmp.eq.s32.totalorder %s17, 1
    %p103 = por %p101, %p102
    %p105 = scmp.ne.s32.totalorder %s90, %s104
    %p106 = scmp.eq.s32.totalorder %s17, 0
    %p107 = por %p105, %p106
    %s109 = sadd.s32 %s108, 1
    %p112 = scmp.eq.s32.totalorder %s11, 1
    %p113 = scmp.ne.s32.totalorder %s108, %s110
    %p114 = scmp.eq.s32.totalorder %s11, 0
    %p115 = por %p113, %p114
    %p116 = scmp.ne.s32.totalorder %s108, %s110
    %p117 = scmp.eq.s32.totalorder %s16, 1
    %p118 = por %p116, %p117
    %p119 = scmp.ne.s32.totalorder %s110, %s111
    %p120 = scmp.eq.s32.totalorder %s16, 0
    %p121 = por %p119, %p120
    %p122 = scmp.ne.s32.totalorder %s110, %s111
    %p123 = scmp.eq.s32.totalorder %s17, 1
    %p124 = por %p122, %p123
    %p126 = scmp.ne.s32.totalorder %s111, %s125
    %p127 = scmp.eq.s32.totalorder %s17, 0
    %p128 = por %p126, %p127
    %s129 = ssub.s32 %s11, %s18
    %p130 = scmp.eq.s32.totalorder %s129, 0
    %s132 = sadd.s32 %s131, 1
    %s133 = scalar_select %p130, %s131, %s132
    %p136 = pneg %p130
    %p137 = scmp.eq.s32.totalorder %s11, 1
    %p138 = por %p136, %p137
    %p139 = scmp.ne.s32.totalorder %s131, %s134
    %p140 = scmp.eq.s32.totalorder %s11, 0
    %p141 = por %p139, %p140
    %p142 = scmp.ne.s32.totalorder %s131, %s134
    %p143 = scmp.eq.s32.totalorder %s16, 1
    %p144 = por %p142, %p143
    %p145 = scmp.ne.s32.totalorder %s134, %s135
    %p146 = scmp.eq.s32.totalorder %s16, 0
    %p147 = por %p145, %p146
    %p148 = scmp.ne.s32.totalorder %s134, %s135
    %p149 = scmp.eq.s32.totalorder %s17, 1
    %p150 = por %p148, %p149
    %p152 = scmp.ne.s32.totalorder %s135, %s151
    %p153 = scmp.eq.s32.totalorder %s17, 0
    %p154 = por %p152, %p153
    %p155 = scmp.le.s32.totalorder 1, %s11
    %p156 = scmp.lt.s32.totalorder %s11, 3
    %p157 = pnand %p155, %p156
    %p158 = pneg %p157
    // Predicated region
    $region9: #{selective_scale_leaky_layer.1} parent=5 // pred_check
      _
    $region10: #{selective_scale_leaky_layer.1} parent=5 // pred_check_branch
      %160 = sbr.rel (%p157) target = $region12
    $region11: #{selective_scale_leaky_layer.1} parent=5 // pred_region
      %s161 = ssub.s32 %s11, 1
      // Predicated region
      $region13: #{selective_scale_leaky_layer.1} parent=11 // pred_check
        %p162 = pneg %p58
      $region14: #{selective_scale_leaky_layer.1} parent=11 // pred_check_branch
        %164 = sbr.rel (%p162) target = $region16
      $region15: #{selective_scale_leaky_layer.1} parent=11 // pred_region
        _
      $region16: #{selective_scale_leaky_layer.1} parent=11 // pred_fallthru
        _
      // Predicated region
      $region17: #{selective_scale_leaky_layer.1} parent=11 // pred_check
        %p165 = pneg %p79
      $region18: #{selective_scale_leaky_layer.1} parent=11 // pred_check_branch
        %167 = sbr.rel (%p165) target = $region20
      $region19: #{selective_scale_leaky_layer.1} parent=11 // pred_region
        _
      $region20: #{selective_scale_leaky_layer.1} parent=11 // pred_fallthru
        _
      // Predicated region
      $region21: #{selective_scale_leaky_layer.1} parent=11 // pred_check
        %p168 = pneg %p100
      $region22: #{selective_scale_leaky_layer.1} parent=11 // pred_check_branch
        %170 = sbr.rel (%p168) target = $region24
      $region23: #{selective_scale_leaky_layer.1} parent=11 // pred_region
        _
      $region24: #{selective_scale_leaky_layer.1} parent=11 // pred_fallthru
        _
      // Predicated region
      $region25: #{selective_scale_leaky_layer.1} parent=11 // pred_check
        %p171 = pneg %p121
      $region26: #{selective_scale_leaky_layer.1} parent=11 // pred_check_branch
        %173 = sbr.rel (%p171) target = $region28
      $region27: #{selective_scale_leaky_layer.1} parent=11 // pred_region
        _
      $region28: #{selective_scale_leaky_layer.1} parent=11 // pred_fallthru
        _
    $region12: #{selective_scale_leaky_layer.1} parent=5 // pred_fallthru
      _
    %p174 = scmp.lt.s32.totalorder %s11, 2
    // Predicated region
    $region29: #{selective_scale_leaky_layer.1} parent=5 // pred_check
      %p175 = pneg %p174
    $region30: #{selective_scale_leaky_layer.1} parent=5 // pred_check_branch
      %177 = sbr.rel (%p175) target = $region32
    $region31: #{selective_scale_leaky_layer.1} parent=5 // pred_region
      // Predicated region
      $region33: #{selective_scale_leaky_layer.1} parent=31 // pred_check
        %p178 = pneg %p31
      $region34: #{selective_scale_leaky_layer.1} parent=31 // pred_check_branch
        %180 = sbr.rel (%p178) target = $region36
      $region35: #{selective_scale_leaky_layer.1} parent=31 // pred_region
        %p181 = scmp.lt.s32.totalorder %s11, 1
        %s182 = scalar_select %p181, %s11, 1
        %s183 = smul.addr %s182, 96
        %s184 = smul.addr %s183, 8
        %s185 = scalar_lea.vmem %s0, %s184
      $region36: #{selective_scale_leaky_layer.1} parent=31 // pred_fallthru
        _
    $region32: #{selective_scale_leaky_layer.1} parent=5 // pred_fallthru
      _
    %p186 = scmp.le.s32.totalorder 1, %s11
    %p187 = scmp.lt.s32.totalorder %s11, 3
    %p188 = pnand %p186, %p187
    %p189 = pneg %p188
    // Predicated region
    $region37: #{selective_scale_leaky_layer.1} parent=5 // pred_check
      _
    $region38: #{selective_scale_leaky_layer.1} parent=5 // pred_check_branch
      %191 = sbr.rel (%p188) target = $region40
    $region39: #{selective_scale_leaky_layer.1} parent=5 // pred_region
      %s192 = ssub.s32 %s11, 1
      %p193 = scmp.lt.s32.totalorder %s16, 1
      %s194 = scalar_select %p193, %s16, 1
      %s195 = smul.addr %s194, 96
      %s196 = smul.addr %s195, 8
      %s197 = scalar_lea.vmem %s0, %s196
      %p198 = pneg %p37
      %p199 = pneg %p34
      %p200 = pneg %p58
      %p201 = pneg %p55
      %p202 = pneg %p79
      %p203 = pneg %p76
      %p204 = pneg %p100
      %p205 = pneg %p97
      %p206 = pneg %p121
      %p207 = pneg %p118
      %p208 = pneg %p147
      %p209 = pneg %p144
      %p210 = scmp.lt.s32.totalorder %s16, 1
      %s211 = scalar_select %p210, %s16, 1
      %s212 = smul.addr %s211, 32
      %s213 = smul.addr %s212, 8
      %s214 = scalar_lea.vmem %s5, %s213
      %p215 = scmp.lt.s32.totalorder %s16, 1
      %s216 = scalar_select %p215, %s16, 1
      %s217 = smul.addr %s216, 96
      %s218 = smul.addr %s217, 8
      %s219 = scalar_lea.vmem %s0, %s218
      %p220 = scmp.lt.s32.totalorder %s16, 1
      %s221 = scalar_select %p220, %s16, 1
      %s222 = smul.addr %s221, 32
      %s223 = smul.addr %s222, 8
      %s224 = scalar_lea.vmem %s5, %s223
      %225 = vst [vmem:[#allocation2] sm:$0xff] 0.0
      %226 = vst [vmem:[#allocation2 + $0x8] sm:$0xff] 0.0
      %227 = vst [vmem:[#allocation2 + $0x10] sm:$0xff] 0.0
      %228 = vst [vmem:[#allocation2 + $0x18] sm:$0xff] 0.0
      %229 = vst [vmem:[#allocation2 + $0x20] sm:$0xff] 0.0
      %230 = vst [vmem:[#allocation2 + $0x28] sm:$0xff] 0.0
      %231 = vst [vmem:[#allocation2 + $0x30] sm:$0xff] 0.0
      %232 = vst [vmem:[#allocation2 + $0x38] sm:$0xff] 0.0
      %233 = vst [vmem:[#allocation2 + $0x40] sm:$0xff] 0.0
      %234 = vst [vmem:[#allocation2 + $0x48] sm:$0xff] 0.0
      %235 = vst [vmem:[#allocation2 + $0x50] sm:$0xff] 0.0
      %236 = vst [vmem:[#allocation2 + $0x58] sm:$0xff] 0.0
      %237 = vst [vmem:[#allocation2 + $0x60] sm:$0xff] 0.0
      %238 = vst [vmem:[#allocation2 + $0x68] sm:$0xff] 0.0
      %239 = vst [vmem:[#allocation2 + $0x70] sm:$0xff] 0.0
      %240 = vst [vmem:[#allocation2 + $0x78] sm:$0xff] 0.0
      loop: start=0, step=1, limit=2
      $region41: #{selective_scale_leaky_layer.1} parent=39 // loop_pre_header
        _
      $region42: #{selective_scale_leaky_layer.1} parent=39 // loop_header
        %s242 = sphi 0, %s246
        %p243 = scmp.ge.s32.totalorder %s242, 2
      $region43: #{selective_scale_leaky_layer.1} parent=39 // loop_header_branch
        %245 = sbr.rel (%p243) target = $region47
      $region44: #{selective_scale_leaky_layer.1} parent=39 // loop_body
        %s247 = smul.u32 %s242, 2048
        %s248 = sshra.s32 %s247, 7
        %s249 = sand.u32 %s247, 127
        %s250 = smul.addr %s248, 8
        %s251 = scalar_lea.vmem %s219, %s250
        %v252 = vld [vmem:[%s251] sm:$0xff]
        %v253 = vld [vmem:[%s251 + $0x8] sm:$0xff]
        %v254 = vld [vmem:[%s251 + $0x10] sm:$0xff]
        %v255 = vld [vmem:[%s251 + $0x18] sm:$0xff]
        %v256 = vld [vmem:[%s251 + $0x20] sm:$0xff]
        %v257 = vld [vmem:[%s251 + $0x28] sm:$0xff]
        %v258 = vld [vmem:[%s251 + $0x30] sm:$0xff]
        %v259 = vld [vmem:[%s251 + $0x38] sm:$0xff]
        %v260 = vld [vmem:[%s251 + $0x40] sm:$0xff]
        %v261 = vld [vmem:[%s251 + $0x48] sm:$0xff]
        %v262 = vld [vmem:[%s251 + $0x50] sm:$0xff]
        %v263 = vld [vmem:[%s251 + $0x58] sm:$0xff]
        %v264 = vld [vmem:[%s251 + $0x60] sm:$0xff]
        %v265 = vld [vmem:[%s251 + $0x68] sm:$0xff]
        %v266 = vld [vmem:[%s251 + $0x70] sm:$0xff]
        %v267 = vld [vmem:[%s251 + $0x78] sm:$0xff]
        %s268 = sadd.s32 %s248, 32
        %s269 = smul.addr %s268, 8
        %s270 = scalar_lea.vmem %s219, %s269
        %v271 = vld [vmem:[%s270] sm:$0xff]
        %v272 = vld [vmem:[%s270 + $0x8] sm:$0xff]
        %v273 = vld [vmem:[%s270 + $0x10] sm:$0xff]
        %v274 = vld [vmem:[%s270 + $0x18] sm:$0xff]
        %v275 = vld [vmem:[%s270 + $0x20] sm:$0xff]
        %v276 = vld [vmem:[%s270 + $0x28] sm:$0xff]
        %v277 = vld [vmem:[%s270 + $0x30] sm:$0xff]
        %v278 = vld [vmem:[%s270 + $0x38] sm:$0xff]
        %v279 = vld [vmem:[%s270 + $0x40] sm:$0xff]
        %v280 = vld [vmem:[%s270 + $0x48] sm:$0xff]
        %v281 = vld [vmem:[%s270 + $0x50] sm:$0xff]
        %v282 = vld [vmem:[%s270 + $0x58] sm:$0xff]
        %v283 = vld [vmem:[%s270 + $0x60] sm:$0xff]
        %v284 = vld [vmem:[%s270 + $0x68] sm:$0xff]
        %v285 = vld [vmem:[%s270 + $0x70] sm:$0xff]
        %v286 = vld [vmem:[%s270 + $0x78] sm:$0xff]
        %v287 = vadd.f32 %v252, %v271
        %v288 = vadd.f32 %v253, %v272
        %v289 = vadd.f32 %v254, %v273
        %v290 = vadd.f32 %v255, %v274
        %v291 = vadd.f32 %v256, %v275
        %v292 = vadd.f32 %v257, %v276
        %v293 = vadd.f32 %v258, %v277
        %v294 = vadd.f32 %v259, %v278
        %v295 = vadd.f32 %v260, %v279
        %v296 = vadd.f32 %v261, %v280
        %v297 = vadd.f32 %v262, %v281
        %v298 = vadd.f32 %v263, %v282
        %v299 = vadd.f32 %v264, %v283
        %v300 = vadd.f32 %v265, %v284
        %v301 = vadd.f32 %v266, %v285
        %v302 = vadd.f32 %v267, %v286
        %s303 = sadd.s32 %s248, 64
        %s304 = smul.addr %s303, 8
        %s305 = scalar_lea.vmem %s219, %s304
        %v306 = vld [vmem:[%s305] sm:$0xff]
        %v307 = vld [vmem:[%s305 + $0x8] sm:$0xff]
        %v308 = vld [vmem:[%s305 + $0x10] sm:$0xff]
        %v309 = vld [vmem:[%s305 + $0x18] sm:$0xff]
        %v310 = vld [vmem:[%s305 + $0x20] sm:$0xff]
        %v311 = vld [vmem:[%s305 + $0x28] sm:$0xff]
        %v312 = vld [vmem:[%s305 + $0x30] sm:$0xff]
        %v313 = vld [vmem:[%s305 + $0x38] sm:$0xff]
        %v314 = vld [vmem:[%s305 + $0x40] sm:$0xff]
        %v315 = vld [vmem:[%s305 + $0x48] sm:$0xff]
        %v316 = vld [vmem:[%s305 + $0x50] sm:$0xff]
        %v317 = vld [vmem:[%s305 + $0x58] sm:$0xff]
        %v318 = vld [vmem:[%s305 + $0x60] sm:$0xff]
        %v319 = vld [vmem:[%s305 + $0x68] sm:$0xff]
        %v320 = vld [vmem:[%s305 + $0x70] sm:$0xff]
        %v321 = vld [vmem:[%s305 + $0x78] sm:$0xff]
        %v322 = vadd.f32 %v287, %v306
        %v323 = vadd.f32 %v288, %v307
        %v324 = vadd.f32 %v289, %v308
        %v325 = vadd.f32 %v290, %v309
        %v326 = vadd.f32 %v291, %v310
        %v327 = vadd.f32 %v292, %v311
        %v328 = vadd.f32 %v293, %v312
        %v329 = vadd.f32 %v294, %v313
        %v330 = vadd.f32 %v295, %v314
        %v331 = vadd.f32 %v296, %v315
        %v332 = vadd.f32 %v297, %v316
        %v333 = vadd.f32 %v298, %v317
        %v334 = vadd.f32 %v299, %v318
        %v335 = vadd.f32 %v300, %v319
        %v336 = vadd.f32 %v301, %v320
        %v337 = vadd.f32 %v302, %v321
        %v338 = vld [vmem:[#allocation2] sm:$0xff]
        %v339 = vld [vmem:[#allocation2 + $0x8] sm:$0xff]
        %v340 = vld [vmem:[#allocation2 + $0x10] sm:$0xff]
        %v341 = vld [vmem:[#allocation2 + $0x18] sm:$0xff]
        %v342 = vld [vmem:[#allocation2 + $0x20] sm:$0xff]
        %v343 = vld [vmem:[#allocation2 + $0x28] sm:$0xff]
        %v344 = vld [vmem:[#allocation2 + $0x30] sm:$0xff]
        %v345 = vld [vmem:[#allocation2 + $0x38] sm:$0xff]
        %v346 = vld [vmem:[#allocation2 + $0x40] sm:$0xff]
        %v347 = vld [vmem:[#allocation2 + $0x48] sm:$0xff]
        %v348 = vld [vmem:[#allocation2 + $0x50] sm:$0xff]
        %v349 = vld [vmem:[#allocation2 + $0x58] sm:$0xff]
        %v350 = vld [vmem:[#allocation2 + $0x60] sm:$0xff]
        %v351 = vld [vmem:[#allocation2 + $0x68] sm:$0xff]
        %v352 = vld [vmem:[#allocation2 + $0x70] sm:$0xff]
        %v353 = vld [vmem:[#allocation2 + $0x78] sm:$0xff]
        %v354 = vadd.f32 %v338, %v322
        %v355 = vadd.f32 %v339, %v323
        %v356 = vadd.f32 %v340, %v324
        %v357 = vadd.f32 %v341, %v325
        %v358 = vadd.f32 %v342, %v326
        %v359 = vadd.f32 %v343, %v327
        %v360 = vadd.f32 %v344, %v328
        %v361 = vadd.f32 %v345, %v329
        %v362 = vadd.f32 %v346, %v330
        %v363 = vadd.f32 %v347, %v331
        %v364 = vadd.f32 %v348, %v332
        %v365 = vadd.f32 %v349, %v333
        %v366 = vadd.f32 %v350, %v334
        %v367 = vadd.f32 %v351, %v335
        %v368 = vadd.f32 %v352, %v336
        %v369 = vadd.f32 %v353, %v337
        %370 = vst [vmem:[#allocation2] sm:$0xff] %v354
        %371 = vst [vmem:[#allocation2 + $0x8] sm:$0xff] %v355
        %372 = vst [vmem:[#allocation2 + $0x10] sm:$0xff] %v356
        %373 = vst [vmem:[#allocation2 + $0x18] sm:$0xff] %v357
        %374 = vst [vmem:[#allocation2 + $0x20] sm:$0xff] %v358
        %375 = vst [vmem:[#allocation2 + $0x28] sm:$0xff] %v359
        %376 = vst [vmem:[#allocation2 + $0x30] sm:$0xff] %v360
        %377 = vst [vmem:[#allocation2 + $0x38] sm:$0xff] %v361
        %378 = vst [vmem:[#allocation2 + $0x40] sm:$0xff] %v362
        %379 = vst [vmem:[#allocation2 + $0x48] sm:$0xff] %v363
        %380 = vst [vmem:[#allocation2 + $0x50] sm:$0xff] %v364
        %381 = vst [vmem:[#allocation2 + $0x58] sm:$0xff] %v365
        %382 = vst [vmem:[#allocation2 + $0x60] sm:$0xff] %v366
        %383 = vst [vmem:[#allocation2 + $0x68] sm:$0xff] %v367
        %384 = vst [vmem:[#allocation2 + $0x70] sm:$0xff] %v368
        %385 = vst [vmem:[#allocation2 + $0x78] sm:$0xff] %v369
      $region45: #{selective_scale_leaky_layer.1} parent=39 // loop_footer
        %s246 = sadd.s32 1, %s242
      $region46: #{selective_scale_leaky_layer.1} parent=39 // loop_footer_branch
        %241 = sbr.rel target = $region42
      $region47: #{selective_scale_leaky_layer.1} parent=39 // loop_exit
        _
      %v386 = vld [vmem:[#allocation2] sm:$0xff]
      %v387 = vld [vmem:[#allocation2 + $0x8] sm:$0xff]
      %v388 = vld [vmem:[#allocation2 + $0x10] sm:$0xff]
      %v389 = vld [vmem:[#allocation2 + $0x18] sm:$0xff]
      %v390 = vld [vmem:[#allocation2 + $0x20] sm:$0xff]
      %v391 = vld [vmem:[#allocation2 + $0x28] sm:$0xff]
      %v392 = vld [vmem:[#allocation2 + $0x30] sm:$0xff]
      %v393 = vld [vmem:[#allocation2 + $0x38] sm:$0xff]
      %v394 = vld [vmem:[#allocation2 + $0x40] sm:$0xff]
      %v395 = vld [vmem:[#allocation2 + $0x48] sm:$0xff]
      %v396 = vld [vmem:[#allocation2 + $0x50] sm:$0xff]
      %v397 = vld [vmem:[#allocation2 + $0x58] sm:$0xff]
      %v398 = vld [vmem:[#allocation2 + $0x60] sm:$0xff]
      %v399 = vld [vmem:[#allocation2 + $0x68] sm:$0xff]
      %v400 = vld [vmem:[#allocation2 + $0x70] sm:$0xff]
      %v401 = vld [vmem:[#allocation2 + $0x78] sm:$0xff]
      %v402 = vadd.f32 %v386, %v387
      %v403 = vadd.f32 %v402, %v388
      %v404 = vadd.f32 %v403, %v389
      %v405 = vadd.f32 %v404, %v390
      %v406 = vadd.f32 %v405, %v391
      %v407 = vadd.f32 %v406, %v392
      %v408 = vadd.f32 %v407, %v393
      %v409 = vadd.f32 %v408, %v394
      %v410 = vadd.f32 %v409, %v395
      %v411 = vadd.f32 %v410, %v396
      %v412 = vadd.f32 %v411, %v397
      %v413 = vadd.f32 %v412, %v398
      %v414 = vadd.f32 %v413, %v399
      %v415 = vadd.f32 %v414, %v400
      %v416 = vadd.f32 %v415, %v401
      %417 = vadd.xlane.f32.xlu0 %v416
      %v418 = vpop.xlane.xlu0 %417
      %v419 = vmul.f32 %v418, 0.00024414063
      %v420 = vld [vmem:[%s1] sm:$0xff]
      %v421 = vmul.f32 %v420, %v419
      %vm422 = vcmask 31744
      %v423 = vsel %vm422, %v421, 0.0
      %v424 = vrot.slane %v423, 4
      %v425 = vadd.f32 %v423, %v424
      %v426 = vrot.slane %v425, 2
      %v427 = vadd.f32 %v425, %v426
      %v428 = vrot.slane %v427, 1
      %v429 = vadd.f32 %v427, %v428
      %v430 = vld [vmem:[%s2] sm:$0x1]
      %v431 = vadd.f32 %v429, %v430
      %vm432 = vcmp.gt.f32.partialorder %v431, 0.0
      %v433 = vmul.f32 %v431, 0.01
      %v434 = vsel %vm432, %v431, %v433
      %v435 = vld [vmem:[%s3] sm:$0x7]
      %v436 = vld [vmem:[%s3 + $0x4] sm:$0x7]
      %v437 = vld [vmem:[%s3 + $0x8] sm:$0x7]
      %v438 = vld [vmem:[%s3 + $0xc] sm:$0x7]
      %v439 = vld [vmem:[%s3 + $0x10] sm:$0x7]
      %v440 = vld [vmem:[%s3 + $0x14] sm:$0x7]
      %v441 = vld [vmem:[%s3 + $0x18] sm:$0x7]
      %v442 = vld [vmem:[%s3 + $0x1c] sm:$0x7]
      %v443 = vlaneseq
      %v444 = vshrl.u32 %v443, 7
      %v445 = vsub.s32 0, %v444
      %v446 = vrot.slane %v434, %v445
      %v447 = vmul.f32 %v435, %v446
      %v448 = vmul.f32 %v436, %v446
      %v449 = vmul.f32 %v437, %v446
      %v450 = vmul.f32 %v438, %v446
      %v451 = vmul.f32 %v439, %v446
      %v452 = vmul.f32 %v440, %v446
      %v453 = vmul.f32 %v441, %v446
      %v454 = vmul.f32 %v442, %v446
      %vm455 = vcmask 26624
      %v456 = vsel %vm455, %v447, 0.0
      %457 = vadd.xlane.f32.xlu0 %v456
      %v458 = vpop.xlane.xlu0 %457
      %v459 = vsel %vm455, %v448, 0.0
      %460 = vadd.xlane.f32.xlu0 %v459
      %v461 = vpop.xlane.xlu0 %460
      %v462 = vsel %vm455, %v449, 0.0
      %463 = vadd.xlane.f32.xlu0 %v462
      %v464 = vpop.xlane.xlu0 %463
      %v465 = vsel %vm455, %v450, 0.0
      %466 = vadd.xlane.f32.xlu0 %v465
      %v467 = vpop.xlane.xlu0 %466
      %v468 = vsel %vm455, %v451, 0.0
      %469 = vadd.xlane.f32.xlu0 %v468
      %v470 = vpop.xlane.xlu0 %469
      %v471 = vsel %vm455, %v452, 0.0
      %472 = vadd.xlane.f32.xlu0 %v471
      %v473 = vpop.xlane.xlu0 %472
      %v474 = vsel %vm455, %v453, 0.0
      %475 = vadd.xlane.f32.xlu0 %v474
      %v476 = vpop.xlane.xlu0 %475
      %v477 = vsel %vm455, %v454, 0.0
      %478 = vadd.xlane.f32.xlu0 %v477
      %v479 = vpop.xlane.xlu0 %478
      %v480 = vld [vmem:[%s4] sm:$0xff]
      %v482 = vlaneseq
      %v483 = vshrl.u32 %v482, 7
      %v484 = vsub.s32 0, %v483
      %v485 = vrot.slane %v480, %v484
      %487 = vbcast.lane.b32.xlu0 %v485, 256
      %v488 = vpop.permute.xlu0 %487
      %v489 = vlaneseq
      %v490 = vshrl.u32 %v489, 7
      %v491 = vsub.s32 1, %v490
      %v492 = vrot.slane %v480, %v491
      %494 = vbcast.lane.b32.xlu0 %v492, 256
      %v495 = vpop.permute.xlu0 %494
      %v496 = vlaneseq
      %v497 = vshrl.u32 %v496, 7
      %v498 = vsub.s32 2, %v497
      %v499 = vrot.slane %v480, %v498
      %501 = vbcast.lane.b32.xlu0 %v499, 256
      %v502 = vpop.permute.xlu0 %501
      %v503 = vlaneseq
      %v504 = vshrl.u32 %v503, 7
      %v505 = vsub.s32 3, %v504
      %v506 = vrot.slane %v480, %v505
      %508 = vbcast.lane.b32.xlu0 %v506, 256
      %v509 = vpop.permute.xlu0 %508
      %v510 = vlaneseq
      %v511 = vshrl.u32 %v510, 7
      %v512 = vsub.s32 4, %v511
      %v513 = vrot.slane %v480, %v512
      %515 = vbcast.lane.b32.xlu0 %v513, 256
      %v516 = vpop.permute.xlu0 %515
      %v517 = vlaneseq
      %v518 = vshrl.u32 %v517, 7
      %v519 = vsub.s32 5, %v518
      %v520 = vrot.slane %v480, %v519
      %522 = vbcast.lane.b32.xlu0 %v520, 256
      %v523 = vpop.permute.xlu0 %522
      %v524 = vlaneseq
      %v525 = vshrl.u32 %v524, 7
      %v526 = vsub.s32 6, %v525
      %v527 = vrot.slane %v480, %v526
      %529 = vbcast.lane.b32.xlu0 %v527, 256
      %v530 = vpop.permute.xlu0 %529
      %v531 = vlaneseq
      %v532 = vshrl.u32 %v531, 7
      %v533 = vsub.s32 7, %v532
      %v534 = vrot.slane %v480, %v533
      %536 = vbcast.lane.b32.xlu0 %v534, 256
      %v537 = vpop.permute.xlu0 %536
      %v546 = vadd.f32 %v458, %v488
      %v547 = vadd.f32 %v461, %v495
      %v548 = vadd.f32 %v464, %v502
      %v549 = vadd.f32 %v467, %v509
      %v550 = vadd.f32 %v470, %v516
      %v551 = vadd.f32 %v473, %v523
      %v552 = vadd.f32 %v476, %v530
      %v553 = vadd.f32 %v479, %v537
      %562 = vset.pattern.permute.xlu0 0
      %563 = vperm.xlu0 %562, %v546
      %v564 = vpop.permute.xlu0 %563
      %565 = vset.pattern.permute.xlu0 0
      %566 = vperm.xlu0 %565, %v547
      %v567 = vpop.permute.xlu0 %566
      %568 = vset.pattern.permute.xlu0 0
      %569 = vperm.xlu0 %568, %v548
      %v570 = vpop.permute.xlu0 %569
      %571 = vset.pattern.permute.xlu0 0
      %572 = vperm.xlu0 %571, %v549
      %v573 = vpop.permute.xlu0 %572
      %574 = vset.pattern.permute.xlu0 0
      %575 = vperm.xlu0 %574, %v550
      %v576 = vpop.permute.xlu0 %575
      %577 = vset.pattern.permute.xlu0 0
      %578 = vperm.xlu0 %577, %v551
      %v579 = vpop.permute.xlu0 %578
      %580 = vset.pattern.permute.xlu0 0
      %581 = vperm.xlu0 %580, %v552
      %v582 = vpop.permute.xlu0 %581
      %583 = vset.pattern.permute.xlu0 0
      %584 = vperm.xlu0 %583, %v553
      %v585 = vpop.permute.xlu0 %584
      %v586 = vlaneseq
      %v587 = vand.u32 %v586, 127
      %v588 = vlaneseq
      %v589 = vshrl.u32 %v588, 7
      %v590 = vsub.s32 %v587, %v589
      %v591 = vrot.slane %v564, %v590
      %v592 = vlaneseq
      %v593 = vshrl.u32 %v592, 7
      %v594 = vsub.s32 %v587, %v593
      %v595 = vrot.slane %v567, %v594
      %v596 = vlaneseq
      %v597 = vshrl.u32 %v596, 7
      %v598 = vsub.s32 %v587, %v597
      %v599 = vrot.slane %v570, %v598
      %v600 = vlaneseq
      %v601 = vshrl.u32 %v600, 7
      %v602 = vsub.s32 %v587, %v601
      %v603 = vrot.slane %v573, %v602
      %v604 = vlaneseq
      %v605 = vshrl.u32 %v604, 7
      %v606 = vsub.s32 %v587, %v605
      %v607 = vrot.slane %v576, %v606
      %v608 = vlaneseq
      %v609 = vshrl.u32 %v608, 7
      %v610 = vsub.s32 %v587, %v609
      %v611 = vrot.slane %v579, %v610
      %v612 = vlaneseq
      %v613 = vshrl.u32 %v612, 7
      %v614 = vsub.s32 %v587, %v613
      %v615 = vrot.slane %v582, %v614
      %v616 = vlaneseq
      %v617 = vshrl.u32 %v616, 7
      %v618 = vsub.s32 %v587, %v617
      %v619 = vrot.slane %v585, %v618
      %vm620 = vcmask 1041409
      %v621 = vsel %vm620, %v595, %v591
      %vm622 = vcmask 1042434
      %v623 = vsel %vm622, %v599, %v621
      %vm624 = vcmask 1043459
      %v625 = vsel %vm624, %v603, %v623
      %vm626 = vcmask 1044484
      %v627 = vsel %vm626, %v607, %v625
      %vm628 = vcmask 1045509
      %v629 = vsel %vm628, %v611, %v627
      %vm630 = vcmask 1046534
      %v631 = vsel %vm630, %v615, %v629
      %vm632 = vcmask 1047559
      %v633 = vsel %vm632, %v619, %v631
      %vm635 = vcmask 23552
      %v636 = vsel %vm635, %v633, -inf
      %637 = vmax.xlane.f32.xlu0 %v636
      %v638 = vpop.xlane.xlu0 %637
      %v640 = vlaneseq
      %v641 = vshrl.u32 %v640, 7
      %v642 = vsub.s32 0, %v641
      %v643 = vrot.slane %v638, %v642
      %v644 = vlaneseq
      %v645 = vshrl.u32 %v644, 7
      %v646 = vsub.s32 1, %v645
      %v647 = vrot.slane %v638, %v646
      %v648 = vlaneseq
      %v649 = vshrl.u32 %v648, 7
      %v650 = vsub.s32 2, %v649
      %v651 = vrot.slane %v638, %v650
      %v652 = vlaneseq
      %v653 = vshrl.u32 %v652, 7
      %v654 = vsub.s32 3, %v653
      %v655 = vrot.slane %v638, %v654
      %v656 = vlaneseq
      %v657 = vshrl.u32 %v656, 7
      %v658 = vsub.s32 4, %v657
      %v659 = vrot.slane %v638, %v658
      %v660 = vlaneseq
      %v661 = vshrl.u32 %v660, 7
      %v662 = vsub.s32 5, %v661
      %v663 = vrot.slane %v638, %v662
      %v664 = vlaneseq
      %v665 = vshrl.u32 %v664, 7
      %v666 = vsub.s32 6, %v665
      %v667 = vrot.slane %v638, %v666
      %v668 = vlaneseq
      %v669 = vshrl.u32 %v668, 7
      %v670 = vsub.s32 7, %v669
      %v671 = vrot.slane %v638, %v670
      %v680 = vsub.f32 %v546, %v643
      %v681 = vsub.f32 %v547, %v647
      %v682 = vsub.f32 %v548, %v651
      %v683 = vsub.f32 %v549, %v655
      %v684 = vsub.f32 %v550, %v659
      %v685 = vsub.f32 %v551, %v663
      %v686 = vsub.f32 %v552, %v667
      %v687 = vsub.f32 %v553, %v671
      %v688 = vmul.f32 %v680, 1.442695
      %v689 = vpow.pop %v688
      %v690 = vmul.f32 %v681, 1.442695
      %v691 = vpow.pop %v690
      %v692 = vmul.f32 %v682, 1.442695
      %v693 = vpow.pop %v692
      %v694 = vmul.f32 %v683, 1.442695
      %v695 = vpow.pop %v694
      %v696 = vmul.f32 %v684, 1.442695
      %v697 = vpow.pop %v696
      %v698 = vmul.f32 %v685, 1.442695
      %v699 = vpow.pop %v698
      %v700 = vmul.f32 %v686, 1.442695
      %v701 = vpow.pop %v700
      %v702 = vmul.f32 %v687, 1.442695
      %v703 = vpow.pop %v702
      %712 = vset.pattern.permute.xlu0 0
      %713 = vperm.xlu0 %712, %v689
      %v714 = vpop.permute.xlu0 %713
      %715 = vset.pattern.permute.xlu0 0
      %716 = vperm.xlu0 %715, %v691
      %v717 = vpop.permute.xlu0 %716
      %718 = vset.pattern.permute.xlu0 0
      %719 = vperm.xlu0 %718, %v693
      %v720 = vpop.permute.xlu0 %719
      %721 = vset.pattern.permute.xlu0 0
      %722 = vperm.xlu0 %721, %v695
      %v723 = vpop.permute.xlu0 %722
      %724 = vset.pattern.permute.xlu0 0
      %725 = vperm.xlu0 %724, %v697
      %v726 = vpop.permute.xlu0 %725
      %727 = vset.pattern.permute.xlu0 0
      %728 = vperm.xlu0 %727, %v699
      %v729 = vpop.permute.xlu0 %728
      %730 = vset.pattern.permute.xlu0 0
      %731 = vperm.xlu0 %730, %v701
      %v732 = vpop.permute.xlu0 %731
      %733 = vset.pattern.permute.xlu0 0
      %734 = vperm.xlu0 %733, %v703
      %v735 = vpop.permute.xlu0 %734
      %v736 = vlaneseq
      %v737 = vshrl.u32 %v736, 7
      %v738 = vsub.s32 %v587, %v737
      %v739 = vrot.slane %v714, %v738
      %v740 = vlaneseq
      %v741 = vshrl.u32 %v740, 7
      %v742 = vsub.s32 %v587, %v741
      %v743 = vrot.slane %v717, %v742
      %v744 = vlaneseq
      %v745 = vshrl.u32 %v744, 7
      %v746 = vsub.s32 %v587, %v745
      %v747 = vrot.slane %v720, %v746
      %v748 = vlaneseq
      %v749 = vshrl.u32 %v748, 7
      %v750 = vsub.s32 %v587, %v749
      %v751 = vrot.slane %v723, %v750
      %v752 = vlaneseq
      %v753 = vshrl.u32 %v752, 7
      %v754 = vsub.s32 %v587, %v753
      %v755 = vrot.slane %v726, %v754
      %v756 = vlaneseq
      %v757 = vshrl.u32 %v756, 7
      %v758 = vsub.s32 %v587, %v757
      %v759 = vrot.slane %v729, %v758
      %v760 = vlaneseq
      %v761 = vshrl.u32 %v760, 7
      %v762 = vsub.s32 %v587, %v761
      %v763 = vrot.slane %v732, %v762
      %v764 = vlaneseq
      %v765 = vshrl.u32 %v764, 7
      %v766 = vsub.s32 %v587, %v765
      %v767 = vrot.slane %v735, %v766
      %v768 = vsel %vm620, %v743, %v739
      %v769 = vsel %vm622, %v747, %v768
      %v770 = vsel %vm624, %v751, %v769
      %v771 = vsel %vm626, %v755, %v770
      %v772 = vsel %vm628, %v759, %v771
      %v773 = vsel %vm630, %v763, %v772
      %v774 = vsel %vm632, %v767, %v773
      %v776 = vsel %vm635, %v774, 0.0
      %777 = vadd.xlane.f32.xlu0 %v776
      %v778 = vpop.xlane.xlu0 %777
      %v780 = vlaneseq
      %v781 = vshrl.u32 %v780, 7
      %v782 = vsub.s32 0, %v781
      %v783 = vrot.slane %v778, %v782
      %v784 = vlaneseq
      %v785 = vshrl.u32 %v784, 7
      %v786 = vsub.s32 1, %v785
      %v787 = vrot.slane %v778, %v786
      %v788 = vlaneseq
      %v789 = vshrl.u32 %v788, 7
      %v790 = vsub.s32 2, %v789
      %v791 = vrot.slane %v778, %v790
      %v792 = vlaneseq
      %v793 = vshrl.u32 %v792, 7
      %v794 = vsub.s32 3, %v793
      %v795 = vrot.slane %v778, %v794
      %v796 = vlaneseq
      %v797 = vshrl.u32 %v796, 7
      %v798 = vsub.s32 4, %v797
      %v799 = vrot.slane %v778, %v798
      %v800 = vlaneseq
      %v801 = vshrl.u32 %v800, 7
      %v802 = vsub.s32 5, %v801
      %v803 = vrot.slane %v778, %v802
      %v804 = vlaneseq
      %v805 = vshrl.u32 %v804, 7
      %v806 = vsub.s32 6, %v805
      %v807 = vrot.slane %v778, %v806
      %v808 = vlaneseq
      %v809 = vshrl.u32 %v808, 7
      %v810 = vsub.s32 7, %v809
      %v811 = vrot.slane %v778, %v810
      %v820 = vrcp.pop %v783
      %v821 = vmul.f32 %v689, %v820
      %v822 = vrcp.pop %v787
      %v823 = vmul.f32 %v691, %v822
      %v824 = vrcp.pop %v791
      %v825 = vmul.f32 %v693, %v824
      %v826 = vrcp.pop %v795
      %v827 = vmul.f32 %v695, %v826
      %v828 = vrcp.pop %v799
      %v829 = vmul.f32 %v697, %v828
      %v830 = vrcp.pop %v803
      %v831 = vmul.f32 %v699, %v830
      %v832 = vrcp.pop %v807
      %v833 = vmul.f32 %v701, %v832
      %v834 = vrcp.pop %v811
      %v835 = vmul.f32 %v703, %v834
      loop: start=0, step=1, limit=2
      $region48: #{selective_scale_leaky_layer.1} parent=39 // loop_pre_header
        _
      $region49: #{selective_scale_leaky_layer.1} parent=39 // loop_header
        %s837 = sphi 0, %s841
        %p838 = scmp.ge.s32.totalorder %s837, 2
      $region50: #{selective_scale_leaky_layer.1} parent=39 // loop_header_branch
        %840 = sbr.rel (%p838) target = $region54
      $region51: #{selective_scale_leaky_layer.1} parent=39 // loop_body
        %s842 = smul.u32 %s837, 2048
        %s843 = sshra.s32 %s842, 7
        %s844 = sand.u32 %s842, 127
        %s845 = smul.addr %s843, 8
        %s846 = scalar_lea.vmem %s219, %s845
        %v847 = vld [vmem:[%s846] sm:$0xff]
        %v848 = vld [vmem:[%s846 + $0x8] sm:$0xff]
        %v849 = vld [vmem:[%s846 + $0x10] sm:$0xff]
        %v850 = vld [vmem:[%s846 + $0x18] sm:$0xff]
        %v851 = vld [vmem:[%s846 + $0x20] sm:$0xff]
        %v852 = vld [vmem:[%s846 + $0x28] sm:$0xff]
        %v853 = vld [vmem:[%s846 + $0x30] sm:$0xff]
        %v854 = vld [vmem:[%s846 + $0x38] sm:$0xff]
        %v855 = vld [vmem:[%s846 + $0x40] sm:$0xff]
        %v856 = vld [vmem:[%s846 + $0x48] sm:$0xff]
        %v857 = vld [vmem:[%s846 + $0x50] sm:$0xff]
        %v858 = vld [vmem:[%s846 + $0x58] sm:$0xff]
        %v859 = vld [vmem:[%s846 + $0x60] sm:$0xff]
        %v860 = vld [vmem:[%s846 + $0x68] sm:$0xff]
        %v861 = vld [vmem:[%s846 + $0x70] sm:$0xff]
        %v862 = vld [vmem:[%s846 + $0x78] sm:$0xff]
        %v863 = vlaneseq
        %v864 = vshrl.u32 %v863, 7
        %v865 = vsub.s32 0, %v864
        %v866 = vrot.slane %v821, %v865
        %v867 = vlaneseq
        %v868 = vshrl.u32 %v867, 7
        %v869 = vsub.s32 0, %v868
        %v870 = vrot.slane %v823, %v869
        %v871 = vlaneseq
        %v872 = vshrl.u32 %v871, 7
        %v873 = vsub.s32 0, %v872
        %v874 = vrot.slane %v825, %v873
        %v875 = vlaneseq
        %v876 = vshrl.u32 %v875, 7
        %v877 = vsub.s32 0, %v876
        %v878 = vrot.slane %v827, %v877
        %v879 = vlaneseq
        %v880 = vshrl.u32 %v879, 7
        %v881 = vsub.s32 0, %v880
        %v882 = vrot.slane %v829, %v881
        %v883 = vlaneseq
        %v884 = vshrl.u32 %v883, 7
        %v885 = vsub.s32 0, %v884
        %v886 = vrot.slane %v831, %v885
        %v887 = vlaneseq
        %v888 = vshrl.u32 %v887, 7
        %v889 = vsub.s32 0, %v888
        %v890 = vrot.slane %v833, %v889
        %v891 = vlaneseq
        %v892 = vshrl.u32 %v891, 7
        %v893 = vsub.s32 0, %v892
        %v894 = vrot.slane %v835, %v893
        %903 = vset.pattern.permute.xlu0 0
        %904 = vperm.xlu0 %903, %v866
        %v905 = vpop.permute.xlu0 %904
        %906 = vset.pattern.permute.xlu0 0
        %907 = vperm.xlu0 %906, %v870
        %v908 = vpop.permute.xlu0 %907
        %909 = vset.pattern.permute.xlu0 0
        %910 = vperm.xlu0 %909, %v874
        %v911 = vpop.permute.xlu0 %910
        %912 = vset.pattern.permute.xlu0 0
        %913 = vperm.xlu0 %912, %v878
        %v914 = vpop.permute.xlu0 %913
        %915 = vset.pattern.permute.xlu0 0
        %916 = vperm.xlu0 %915, %v882
        %v917 = vpop.permute.xlu0 %916
        %918 = vset.pattern.permute.xlu0 0
        %919 = vperm.xlu0 %918, %v886
        %v920 = vpop.permute.xlu0 %919
        %921 = vset.pattern.permute.xlu0 0
        %922 = vperm.xlu0 %921, %v890
        %v923 = vpop.permute.xlu0 %922
        %924 = vset.pattern.permute.xlu0 0
        %925 = vperm.xlu0 %924, %v894
        %v926 = vpop.permute.xlu0 %925
        %v927 = vsel %vm620, %v908, %v905
        %v928 = vsel %vm622, %v911, %v927
        %v929 = vsel %vm624, %v914, %v928
        %v930 = vsel %vm626, %v917, %v929
        %v931 = vsel %vm628, %v920, %v930
        %v932 = vsel %vm630, %v923, %v931
        %v933 = vsel %vm632, %v926, %v932
        %v935 = vmul.f32 %v847, %v933
        %v936 = vmul.f32 %v848, %v933
        %v937 = vmul.f32 %v849, %v933
        %v938 = vmul.f32 %v850, %v933
        %v939 = vmul.f32 %v851, %v933
        %v940 = vmul.f32 %v852, %v933
        %v941 = vmul.f32 %v853, %v933
        %v942 = vmul.f32 %v854, %v933
        %v943 = vmul.f32 %v855, %v933
        %v944 = vmul.f32 %v856, %v933
        %v945 = vmul.f32 %v857, %v933
        %v946 = vmul.f32 %v858, %v933
        %v947 = vmul.f32 %v859, %v933
        %v948 = vmul.f32 %v860, %v933
        %v949 = vmul.f32 %v861, %v933
        %v950 = vmul.f32 %v862, %v933
        %s951 = sadd.s32 %s843, 32
        %s952 = smul.addr %s951, 8
        %s953 = scalar_lea.vmem %s219, %s952
        %v954 = vld [vmem:[%s953] sm:$0xff]
        %v955 = vld [vmem:[%s953 + $0x8] sm:$0xff]
        %v956 = vld [vmem:[%s953 + $0x10] sm:$0xff]
        %v957 = vld [vmem:[%s953 + $0x18] sm:$0xff]
        %v958 = vld [vmem:[%s953 + $0x20] sm:$0xff]
        %v959 = vld [vmem:[%s953 + $0x28] sm:$0xff]
        %v960 = vld [vmem:[%s953 + $0x30] sm:$0xff]
        %v961 = vld [vmem:[%s953 + $0x38] sm:$0xff]
        %v962 = vld [vmem:[%s953 + $0x40] sm:$0xff]
        %v963 = vld [vmem:[%s953 + $0x48] sm:$0xff]
        %v964 = vld [vmem:[%s953 + $0x50] sm:$0xff]
        %v965 = vld [vmem:[%s953 + $0x58] sm:$0xff]
        %v966 = vld [vmem:[%s953 + $0x60] sm:$0xff]
        %v967 = vld [vmem:[%s953 + $0x68] sm:$0xff]
        %v968 = vld [vmem:[%s953 + $0x70] sm:$0xff]
        %v969 = vld [vmem:[%s953 + $0x78] sm:$0xff]
        %v970 = vlaneseq
        %v971 = vshrl.u32 %v970, 7
        %v972 = vsub.s32 1, %v971
        %v973 = vrot.slane %v821, %v972
        %v974 = vlaneseq
        %v975 = vshrl.u32 %v974, 7
        %v976 = vsub.s32 1, %v975
        %v977 = vrot.slane %v823, %v976
        %v978 = vlaneseq
        %v979 = vshrl.u32 %v978, 7
        %v980 = vsub.s32 1, %v979
        %v981 = vrot.slane %v825, %v980
        %v982 = vlaneseq
        %v983 = vshrl.u32 %v982, 7
        %v984 = vsub.s32 1, %v983
        %v985 = vrot.slane %v827, %v984
        %v986 = vlaneseq
        %v987 = vshrl.u32 %v986, 7
        %v988 = vsub.s32 1, %v987
        %v989 = vrot.slane %v829, %v988
        %v990 = vlaneseq
        %v991 = vshrl.u32 %v990, 7
        %v992 = vsub.s32 1, %v991
        %v993 = vrot.slane %v831, %v992
        %v994 = vlaneseq
        %v995 = vshrl.u32 %v994, 7
        %v996 = vsub.s32 1, %v995
        %v997 = vrot.slane %v833, %v996
        %v998 = vlaneseq
        %v999 = vshrl.u32 %v998, 7
        %v1000 = vsub.s32 1, %v999
        %v1001 = vrot.slane %v835, %v1000
        %1010 = vset.pattern.permute.xlu0 0
        %1011 = vperm.xlu0 %1010, %v973
        %v1012 = vpop.permute.xlu0 %1011
        %1013 = vset.pattern.permute.xlu0 0
        %1014 = vperm.xlu0 %1013, %v977
        %v1015 = vpop.permute.xlu0 %1014
        %1016 = vset.pattern.permute.xlu0 0
        %1017 = vperm.xlu0 %1016, %v981
        %v1018 = vpop.permute.xlu0 %1017
        %1019 = vset.pattern.permute.xlu0 0
        %1020 = vperm.xlu0 %1019, %v985
        %v1021 = vpop.permute.xlu0 %1020
        %1022 = vset.pattern.permute.xlu0 0
        %1023 = vperm.xlu0 %1022, %v989
        %v1024 = vpop.permute.xlu0 %1023
        %1025 = vset.pattern.permute.xlu0 0
        %1026 = vperm.xlu0 %1025, %v993
        %v1027 = vpop.permute.xlu0 %1026
        %1028 = vset.pattern.permute.xlu0 0
        %1029 = vperm.xlu0 %1028, %v997
        %v1030 = vpop.permute.xlu0 %1029
        %1031 = vset.pattern.permute.xlu0 0
        %1032 = vperm.xlu0 %1031, %v1001
        %v1033 = vpop.permute.xlu0 %1032
        %v1034 = vsel %vm620, %v1015, %v1012
        %v1035 = vsel %vm622, %v1018, %v1034
        %v1036 = vsel %vm624, %v1021, %v1035
        %v1037 = vsel %vm626, %v1024, %v1036
        %v1038 = vsel %vm628, %v1027, %v1037
        %v1039 = vsel %vm630, %v1030, %v1038
        %v1040 = vsel %vm632, %v1033, %v1039
        %v1042 = vmul.f32 %v954, %v1040
        %v1043 = vmul.f32 %v955, %v1040
        %v1044 = vmul.f32 %v956, %v1040
        %v1045 = vmul.f32 %v957, %v1040
        %v1046 = vmul.f32 %v958, %v1040
        %v1047 = vmul.f32 %v959, %v1040
        %v1048 = vmul.f32 %v960, %v1040
        %v1049 = vmul.f32 %v961, %v1040
        %v1050 = vmul.f32 %v962, %v1040
        %v1051 = vmul.f32 %v963, %v1040
        %v1052 = vmul.f32 %v964, %v1040
        %v1053 = vmul.f32 %v965, %v1040
        %v1054 = vmul.f32 %v966, %v1040
        %v1055 = vmul.f32 %v967, %v1040
        %v1056 = vmul.f32 %v968, %v1040
        %v1057 = vmul.f32 %v969, %v1040
        %v1058 = vadd.f32 %v935, %v1042
        %v1059 = vadd.f32 %v936, %v1043
        %v1060 = vadd.f32 %v937, %v1044
        %v1061 = vadd.f32 %v938, %v1045
        %v1062 = vadd.f32 %v939, %v1046
        %v1063 = vadd.f32 %v940, %v1047
        %v1064 = vadd.f32 %v941, %v1048
        %v1065 = vadd.f32 %v942, %v1049
        %v1066 = vadd.f32 %v943, %v1050
        %v1067 = vadd.f32 %v944, %v1051
        %v1068 = vadd.f32 %v945, %v1052
        %v1069 = vadd.f32 %v946, %v1053
        %v1070 = vadd.f32 %v947, %v1054
        %v1071 = vadd.f32 %v948, %v1055
        %v1072 = vadd.f32 %v949, %v1056
        %v1073 = vadd.f32 %v950, %v1057
        %s1074 = sadd.s32 %s843, 64
        %s1075 = smul.addr %s1074, 8
        %s1076 = scalar_lea.vmem %s219, %s1075
        %v1077 = vld [vmem:[%s1076] sm:$0xff]
        %v1078 = vld [vmem:[%s1076 + $0x8] sm:$0xff]
        %v1079 = vld [vmem:[%s1076 + $0x10] sm:$0xff]
        %v1080 = vld [vmem:[%s1076 + $0x18] sm:$0xff]
        %v1081 = vld [vmem:[%s1076 + $0x20] sm:$0xff]
        %v1082 = vld [vmem:[%s1076 + $0x28] sm:$0xff]
        %v1083 = vld [vmem:[%s1076 + $0x30] sm:$0xff]
        %v1084 = vld [vmem:[%s1076 + $0x38] sm:$0xff]
        %v1085 = vld [vmem:[%s1076 + $0x40] sm:$0xff]
        %v1086 = vld [vmem:[%s1076 + $0x48] sm:$0xff]
        %v1087 = vld [vmem:[%s1076 + $0x50] sm:$0xff]
        %v1088 = vld [vmem:[%s1076 + $0x58] sm:$0xff]
        %v1089 = vld [vmem:[%s1076 + $0x60] sm:$0xff]
        %v1090 = vld [vmem:[%s1076 + $0x68] sm:$0xff]
        %v1091 = vld [vmem:[%s1076 + $0x70] sm:$0xff]
        %v1092 = vld [vmem:[%s1076 + $0x78] sm:$0xff]
        %v1093 = vlaneseq
        %v1094 = vshrl.u32 %v1093, 7
        %v1095 = vsub.s32 2, %v1094
        %v1096 = vrot.slane %v821, %v1095
        %v1097 = vlaneseq
        %v1098 = vshrl.u32 %v1097, 7
        %v1099 = vsub.s32 2, %v1098
        %v1100 = vrot.slane %v823, %v1099
        %v1101 = vlaneseq
        %v1102 = vshrl.u32 %v1101, 7
        %v1103 = vsub.s32 2, %v1102
        %v1104 = vrot.slane %v825, %v1103
        %v1105 = vlaneseq
        %v1106 = vshrl.u32 %v1105, 7
        %v1107 = vsub.s32 2, %v1106
        %v1108 = vrot.slane %v827, %v1107
        %v1109 = vlaneseq
        %v1110 = vshrl.u32 %v1109, 7
        %v1111 = vsub.s32 2, %v1110
        %v1112 = vrot.slane %v829, %v1111
        %v1113 = vlaneseq
        %v1114 = vshrl.u32 %v1113, 7
        %v1115 = vsub.s32 2, %v1114
        %v1116 = vrot.slane %v831, %v1115
        %v1117 = vlaneseq
        %v1118 = vshrl.u32 %v1117, 7
        %v1119 = vsub.s32 2, %v1118
        %v1120 = vrot.slane %v833, %v1119
        %v1121 = vlaneseq
        %v1122 = vshrl.u32 %v1121, 7
        %v1123 = vsub.s32 2, %v1122
        %v1124 = vrot.slane %v835, %v1123
        %1133 = vset.pattern.permute.xlu0 0
        %1134 = vperm.xlu0 %1133, %v1096
        %v1135 = vpop.permute.xlu0 %1134
        %1136 = vset.pattern.permute.xlu0 0
        %1137 = vperm.xlu0 %1136, %v1100
        %v1138 = vpop.permute.xlu0 %1137
        %1139 = vset.pattern.permute.xlu0 0
        %1140 = vperm.xlu0 %1139, %v1104
        %v1141 = vpop.permute.xlu0 %1140
        %1142 = vset.pattern.permute.xlu0 0
        %1143 = vperm.xlu0 %1142, %v1108
        %v1144 = vpop.permute.xlu0 %1143
        %1145 = vset.pattern.permute.xlu0 0
        %1146 = vperm.xlu0 %1145, %v1112
        %v1147 = vpop.permute.xlu0 %1146
        %1148 = vset.pattern.permute.xlu0 0
        %1149 = vperm.xlu0 %1148, %v1116
        %v1150 = vpop.permute.xlu0 %1149
        %1151 = vset.pattern.permute.xlu0 0
        %1152 = vperm.xlu0 %1151, %v1120
        %v1153 = vpop.permute.xlu0 %1152
        %1154 = vset.pattern.permute.xlu0 0
        %1155 = vperm.xlu0 %1154, %v1124
        %v1156 = vpop.permute.xlu0 %1155
        %v1157 = vsel %vm620, %v1138, %v1135
        %v1158 = vsel %vm622, %v1141, %v1157
        %v1159 = vsel %vm624, %v1144, %v1158
        %v1160 = vsel %vm626, %v1147, %v1159
        %v1161 = vsel %vm628, %v1150, %v1160
        %v1162 = vsel %vm630, %v1153, %v1161
        %v1163 = vsel %vm632, %v1156, %v1162
        %v1165 = vmul.f32 %v1077, %v1163
        %v1166 = vmul.f32 %v1078, %v1163
        %v1167 = vmul.f32 %v1079, %v1163
        %v1168 = vmul.f32 %v1080, %v1163
        %v1169 = vmul.f32 %v1081, %v1163
        %v1170 = vmul.f32 %v1082, %v1163
        %v1171 = vmul.f32 %v1083, %v1163
        %v1172 = vmul.f32 %v1084, %v1163
        %v1173 = vmul.f32 %v1085, %v1163
        %v1174 = vmul.f32 %v1086, %v1163
        %v1175 = vmul.f32 %v1087, %v1163
        %v1176 = vmul.f32 %v1088, %v1163
        %v1177 = vmul.f32 %v1089, %v1163
        %v1178 = vmul.f32 %v1090, %v1163
        %v1179 = vmul.f32 %v1091, %v1163
        %v1180 = vmul.f32 %v1092, %v1163
        %v1181 = vadd.f32 %v1058, %v1165
        %v1182 = vadd.f32 %v1059, %v1166
        %v1183 = vadd.f32 %v1060, %v1167
        %v1184 = vadd.f32 %v1061, %v1168
        %v1185 = vadd.f32 %v1062, %v1169
        %v1186 = vadd.f32 %v1063, %v1170
        %v1187 = vadd.f32 %v1064, %v1171
        %v1188 = vadd.f32 %v1065, %v1172
        %v1189 = vadd.f32 %v1066, %v1173
        %v1190 = vadd.f32 %v1067, %v1174
        %v1191 = vadd.f32 %v1068, %v1175
        %v1192 = vadd.f32 %v1069, %v1176
        %v1193 = vadd.f32 %v1070, %v1177
        %v1194 = vadd.f32 %v1071, %v1178
        %v1195 = vadd.f32 %v1072, %v1179
        %v1196 = vadd.f32 %v1073, %v1180
        %s1197 = smul.addr %s843, 8
        %s1198 = scalar_lea.vmem %s224, %s1197
        %1199 = vst [vmem:[%s1198] sm:$0xff] %v1181
        %1200 = vst [vmem:[%s1198 + $0x8] sm:$0xff] %v1182
        %1201 = vst [vmem:[%s1198 + $0x10] sm:$0xff] %v1183
        %1202 = vst [vmem:[%s1198 + $0x18] sm:$0xff] %v1184
        %1203 = vst [vmem:[%s1198 + $0x20] sm:$0xff] %v1185
        %1204 = vst [vmem:[%s1198 + $0x28] sm:$0xff] %v1186
        %1205 = vst [vmem:[%s1198 + $0x30] sm:$0xff] %v1187
        %1206 = vst [vmem:[%s1198 + $0x38] sm:$0xff] %v1188
        %1207 = vst [vmem:[%s1198 + $0x40] sm:$0xff] %v1189
        %1208 = vst [vmem:[%s1198 + $0x48] sm:$0xff] %v1190
        %1209 = vst [vmem:[%s1198 + $0x50] sm:$0xff] %v1191
        %1210 = vst [vmem:[%s1198 + $0x58] sm:$0xff] %v1192
        %1211 = vst [vmem:[%s1198 + $0x60] sm:$0xff] %v1193
        %1212 = vst [vmem:[%s1198 + $0x68] sm:$0xff] %v1194
        %1213 = vst [vmem:[%s1198 + $0x70] sm:$0xff] %v1195
        %1214 = vst [vmem:[%s1198 + $0x78] sm:$0xff] %v1196
      $region52: #{selective_scale_leaky_layer.1} parent=39 // loop_footer
        %s841 = sadd.s32 1, %s837
      $region53: #{selective_scale_leaky_layer.1} parent=39 // loop_footer_branch
        %836 = sbr.rel target = $region49
      $region54: #{selective_scale_leaky_layer.1} parent=39 // loop_exit
        _
      %p1215 = scmp.lt.s32.totalorder %s16, 1
      %s1216 = scalar_select %p1215, %s16, 1
      %s1217 = smul.addr %s1216, 32
      %s1218 = smul.addr %s1217, 8
      %s1219 = scalar_lea.vmem %s5, %s1218
      // Predicated region
      $region55: #{selective_scale_leaky_layer.1} parent=39 // pred_check
        %p1220 = pneg %p144
      $region56: #{selective_scale_leaky_layer.1} parent=39 // pred_check_branch
        %1222 = sbr.rel (%p1220) target = $region58
      $region57: #{selective_scale_leaky_layer.1} parent=39 // pred_region
        _
      $region58: #{selective_scale_leaky_layer.1} parent=39 // pred_fallthru
        _
    $region40: #{selective_scale_leaky_layer.1} parent=5 // pred_fallthru
      _
    %p1223 = scmp.le.s32.totalorder 2, %s11
    // Predicated region
    $region59: #{selective_scale_leaky_layer.1} parent=5 // pred_check
      %p1224 = pneg %p1223
    $region60: #{selective_scale_leaky_layer.1} parent=5 // pred_check_branch
      %1226 = sbr.rel (%p1224) target = $region62
    $region61: #{selective_scale_leaky_layer.1} parent=5 // pred_region
      %s1227 = ssub.s32 %s11, 2
      // Predicated region
      $region63: #{selective_scale_leaky_layer.1} parent=61 // pred_check
        %p1228 = pneg %p150
      $region64: #{selective_scale_leaky_layer.1} parent=61 // pred_check_branch
        %1230 = sbr.rel (%p1228) target = $region66
      $region65: #{selective_scale_leaky_layer.1} parent=61 // pred_region
        %p1231 = scmp.lt.s32.totalorder %s17, 1
        %s1232 = scalar_select %p1231, %s17, 1
        %s1233 = smul.addr %s1232, 32
        %s1234 = smul.addr %s1233, 8
        %s1235 = scalar_lea.vmem %s5, %s1234
      $region66: #{selective_scale_leaky_layer.1} parent=61 // pred_fallthru
        _
    $region62: #{selective_scale_leaky_layer.1} parent=5 // pred_fallthru
      _
  $region6: #{selective_scale_leaky_layer.1} parent=0 // loop_footer
    %s15 = sadd.s32 1, %s11
  $region7: #{selective_scale_leaky_layer.1} parent=0 // loop_footer_branch
    %10 = sbr.rel target = $region3
  $region8: #{selective_scale_leaky_layer.1} parent=0 // loop_exit
    _

</llo_original>
